<compile_context>
chip_gen: v7x
topology: tpu7x:2x2x1
jax: 0.10.0
libtpu: 0.0.40
codegen_flags: <defaults>
</compile_context>

<pallas_src>
import functools

import jax
import jax.numpy as jnp
from jax.experimental import pallas as pl
from jax.experimental.pallas import tpu as pltpu

C = 64            # Conv1d in/out channels fixed by the module
LANES = 2 * C     # two tokens packed per 128-lane row
EPS = 1e-5
MIN_BLOCKS = 8    # target minimum grid steps for large inputs


def _round_up(a, m):
    return ((a + m - 1) // m) * m


def _choose_tile(m2, tm, align):
    """Pick the packed-row tile size (m2 = number of packed rows)."""
    if m2 <= tm:
        # Single block equal to the full array dim: always legal (no (8,128)
        # divisibility requirement for full-dim blocks), no masking needed.
        return m2
    # Large input: biggest tile <= tm, but keep >= MIN_BLOCKS grid steps so
    # both v7x TensorCores get work and the pipeline has depth.
    cap = _round_up(pl.cdiv(m2, MIN_BLOCKS), align)
    return max(align, min(tm, cap))


def _conv_ln_kernel(x_ref, w_ref, red_ref, p_ref, o_ref, *, eps):
    # x_ref:   (tm, 128)   two tokens per row, channels-last   (slab dtype)
    # w_ref:   (128, 128)  blockdiag(W^T, W^T), resident       (slab dtype)
    # red_ref: (128, 128)  blockdiag(ones/64, ones/64), resident (f32)
    # p_ref:   (3, 128)    rows = [conv bias, ln gamma, ln beta], tiled (f32)
    # o_ref:   (tm, 128)   (slab dtype)
    x = x_ref[...]
    w = w_ref[...]
    red = red_ref[...]
    p = p_ref[...]
    bias = p[0:1, :]
    gamma = p[1:2, :]
    beta = p[2:3, :]

    # kernel_size=1 Conv1d == per-token channel matmul (MXU).  The block-
    # diagonal weight keeps each packed token's channels independent.
    y = jnp.dot(x, w, preferred_element_type=jnp.float32) + bias

    # Per-64-lane LayerNorm stats via two *independent* MXU reductions; the
    # blockdiag(1/64) matrix broadcasts each half's mean back to its 64 lanes.
    mean = jnp.dot(y, red, preferred_element_type=jnp.float32)
    mean_sq = jnp.dot(y * y, red, preferred_element_type=jnp.float32)
    var = jnp.maximum(mean_sq - mean * mean, 0.0)   # guard tiny negative

    out = (y - mean) * jax.lax.rsqrt(var + eps) * gamma + beta
    o_ref[...] = out.astype(o_ref.dtype)


def make_conv_layernorm(w, b, gamma, beta, *, eps=EPS, tm=4096):
    """Build a jitted forward.  w: (64, 64) conv weight (out, in); x: (B, L, 64)."""
    # ---- parameter prep, done once (hoisted out of the per-call path) ----
    w_t = w.astype(jnp.float32).T                      # (C_in, C_out)
    zeros = jnp.zeros((C, C), jnp.float32)
    w_big = jnp.block([[w_t, zeros], [zeros, w_t]])    # (128, 128)

    ones = jnp.full((C, C), 1.0 / C, jnp.float32)
    red = jnp.block([[ones, zeros], [zeros, ones]])    # (128, 128)

    params = jnp.stack(
        [jnp.tile(b.astype(jnp.float32), 2),
         jnp.tile(gamma.astype(jnp.float32), 2),
         jnp.tile(beta.astype(jnp.float32), 2)], axis=0)   # (3, 128)

    kernel = functools.partial(_conv_ln_kernel, eps=eps)

    @jax.jit
    def fwd(x):
        B, L, c_in = x.shape
        assert c_in == C
        M = B * L

        # bf16 slabs halve HBM bytes; stats/accumulation stay f32 regardless.
        slab_dtype = jnp.bfloat16 if x.dtype == jnp.bfloat16 else jnp.float32
        align = 16 if slab_dtype == jnp.bfloat16 else 8

        x2 = x.reshape(M, C).astype(slab_dtype)
        if M % 2:                                  # rare: one padding token
            x2 = jnp.pad(x2, ((0, 1), (0, 0)))
        m_even = x2.shape[0]
        m2 = m_even // 2
        x_pack = x2.reshape(m2, LANES)             # free bitcast (contiguous)

        tm_eff = _choose_tile(m2, tm, align)
        grid = (pl.cdiv(m2, tm_eff),)              # ragged last block is masked

        itemsize = jnp.dtype(slab_dtype).itemsize
        cost = pl.CostEstimate(
            flops=int(2 * m2 * LANES * LANES * 3),        # 3 matmuls per row
            transcendentals=int(m2 * LANES),              # rsqrt
            bytes_accessed=int(2 * m2 * LANES * itemsize  # in + out slabs
                               + 2 * LANES * LANES * 4 + 3 * LANES * 4),
        )

        out_pack = pl.pallas_call(
            kernel,
            out_shape=jax.ShapeDtypeStruct((m2, LANES), slab_dtype),
            grid_spec=pltpu.PrefetchScalarGridSpec(
                num_scalar_prefetch=0,
                grid=grid,
                in_specs=[
                    pl.BlockSpec((tm_eff, LANES), lambda i: (i, 0)),  # tokens
                    pl.BlockSpec((LANES, LANES), lambda i: (0, 0)),   # weight
                    pl.BlockSpec((LANES, LANES), lambda i: (0, 0)),   # reduce
                    pl.BlockSpec((3, LANES), lambda i: (0, 0)),       # params
                ],
                out_specs=pl.BlockSpec((tm_eff, LANES), lambda i: (i, 0)),
            ),
            compiler_params=pltpu.CompilerParams(
                dimension_semantics=("parallel",),
                vmem_limit_bytes=32 * 1024 * 1024),
            cost_estimate=cost,
        )(x_pack, w_big.astype(slab_dtype), red, params)

        out = out_pack.reshape(m_even, C)          # free bitcast
        if M % 2:
            out = out[:M]
        return out.reshape(B, L, C).astype(x.dtype)

    return fwd


def reference(x, w, b, gamma, beta, eps=EPS):
    """Pure-JAX reference matching the PyTorch module."""
    y = jnp.einsum("blc,oc->blo", x, w) + b
    mean = jnp.mean(y, axis=-1, keepdims=True)
    var = jnp.mean((y - mean) ** 2, axis=-1, keepdims=True)
    return (y - mean) / jnp.sqrt(var + eps) * gamma + beta


if __name__ == "__main__":
    key = jax.random.PRNGKey(0)
    k_x, k_w, k_b, k_g, k_beta = jax.random.split(key, 5)

    B, L = 2, 8
    x = jax.random.normal(k_x, (B, L, C), dtype=jnp.float32)

    # Deterministic parameter init (shapes from the module __init__):
    #   Conv1d(64, 64, 1): weight (64, 64, 1) -> squeeze to (64, 64); bias (64,)
    #   LayerNorm(64): gamma (64,), beta (64,)
    w = jax.random.normal(k_w, (C, C), dtype=jnp.float32) * 0.05
    b = jax.random.normal(k_b, (C,), dtype=jnp.float32) * 0.05
    gamma = 1.0 + 0.1 * jax.random.normal(k_g, (C,), dtype=jnp.float32)
    beta = 0.1 * jax.random.normal(k_beta, (C,), dtype=jnp.float32)

    fwd = make_conv_layernorm(w, b, gamma, beta)
    out = fwd(x)
    jax.block_until_ready(out)

    ref = reference(x, w, b, gamma, beta)
    assert out.shape == (B, L, C)
    err = jnp.max(jnp.abs(out - ref))
    assert err < 2e-4, err

    print("KERNEL_OK")
</pallas_src>

<mosaic_0001>
module attributes {stable_mosaic.version = 11 : i64} {
  func.func @_conv_ln_kernel(%arg0: i32, %arg1: memref<8x128xf32, #tpu.memory_space<vmem>>, %arg2: memref<128x128xf32, #tpu.memory_space<vmem>>, %arg3: memref<128x128xf32, #tpu.memory_space<vmem>>, %arg4: memref<3x128xf32, #tpu.memory_space<vmem>>, %arg5: memref<8x128xf32, #tpu.memory_space<vmem>>) attributes {dimension_semantics = [#tpu.dimension_semantics<parallel>], iteration_bounds = array<i64: 1>, scalar_prefetch = 0 : i64, scratch_operands = 0 : i64, tpu.core_type = #tpu.core_type<tc>, window_params = [{transform_indices = @transform_0, window_bounds = array<i64: 8, 128>}, {pipeline_mode = #tpu.pipeline_mode<synchronous>, transform_indices = @transform_1, window_bounds = array<i64: 128, 128>}, {pipeline_mode = #tpu.pipeline_mode<synchronous>, transform_indices = @transform_2, window_bounds = array<i64: 128, 128>}, {pipeline_mode = #tpu.pipeline_mode<synchronous>, transform_indices = @transform_3, window_bounds = array<i64: 3, 128>}, {transform_indices = @transform_4, window_bounds = array<i64: 8, 128>}]} {
    %c0 = arith.constant 0 : index
    %c0_0 = arith.constant 0 : index
    %0 = vector.load %arg1[%c0, %c0_0] : memref<8x128xf32, #tpu.memory_space<vmem>>, vector<8x128xf32>
    %c0_1 = arith.constant 0 : index
    %c0_2 = arith.constant 0 : index
    %1 = vector.load %arg2[%c0_1, %c0_2] : memref<128x128xf32, #tpu.memory_space<vmem>>, vector<128x128xf32>
    %c0_3 = arith.constant 0 : index
    %c0_4 = arith.constant 0 : index
    %2 = vector.load %arg3[%c0_3, %c0_4] : memref<128x128xf32, #tpu.memory_space<vmem>>, vector<128x128xf32>
    %c0_5 = arith.constant 0 : index
    %c0_6 = arith.constant 0 : index
    %3 = vector.load %arg4[%c0_5, %c0_6] : memref<3x128xf32, #tpu.memory_space<vmem>>, vector<3x128xf32>
    %4 = vector.extract_strided_slice %3 {offsets = [0, 0], sizes = [1, 128], strides = [1, 1]} : vector<3x128xf32> to vector<1x128xf32>
    %5 = vector.extract_strided_slice %3 {offsets = [1, 0], sizes = [1, 128], strides = [1, 1]} : vector<3x128xf32> to vector<1x128xf32>
    %6 = vector.extract_strided_slice %3 {offsets = [2, 0], sizes = [1, 128], strides = [1, 1]} : vector<3x128xf32> to vector<1x128xf32>
    %cst = arith.constant dense<0.000000e+00> : vector<8x128xf32>
    %7 = tpu.matmul %0, %1, %cst {dimension_numbers = #tpu.dot_dimension_numbers<[1], [0], [0], [1], [0, 0, 1, 1], [], []>} : vector<8x128xf32>, vector<128x128xf32>, vector<8x128xf32> -> vector<8x128xf32>
    %8 = vector.broadcast %4 : vector<1x128xf32> to vector<8x128xf32>
    %9 = arith.addf %7, %8 : vector<8x128xf32>
    %cst_7 = arith.constant dense<0.000000e+00> : vector<8x128xf32>
    %10 = tpu.matmul %9, %2, %cst_7 {dimension_numbers = #tpu.dot_dimension_numbers<[1], [0], [0], [1], [0, 0, 1, 1], [], []>} : vector<8x128xf32>, vector<128x128xf32>, vector<8x128xf32> -> vector<8x128xf32>
    %11 = arith.mulf %9, %9 : vector<8x128xf32>
    %cst_8 = arith.constant dense<0.000000e+00> : vector<8x128xf32>
    %12 = tpu.matmul %11, %2, %cst_8 {dimension_numbers = #tpu.dot_dimension_numbers<[1], [0], [0], [1], [0, 0, 1, 1], [], []>} : vector<8x128xf32>, vector<128x128xf32>, vector<8x128xf32> -> vector<8x128xf32>
    %13 = arith.mulf %10, %10 : vector<8x128xf32>
    %14 = arith.subf %12, %13 : vector<8x128xf32>
    %cst_9 = arith.constant 0.000000e+00 : f32
    %15 = vector.broadcast %cst_9 : f32 to vector<8x128xf32>
    %16 = arith.maximumf %14, %15 : vector<8x128xf32>
    %17 = arith.subf %9, %10 : vector<8x128xf32>
    %cst_10 = arith.constant 9.99999974E-6 : f32
    %18 = vector.broadcast %cst_10 : f32 to vector<8x128xf32>
    %19 = arith.addf %16, %18 : vector<8x128xf32>
    %20 = math.rsqrt %19 : vector<8x128xf32>
    %21 = arith.mulf %17, %20 : vector<8x128xf32>
    %22 = vector.broadcast %5 : vector<1x128xf32> to vector<8x128xf32>
    %23 = arith.mulf %21, %22 : vector<8x128xf32>
    %24 = vector.broadcast %6 : vector<1x128xf32> to vector<8x128xf32>
    %25 = arith.addf %23, %24 : vector<8x128xf32>
    %c0_11 = arith.constant 0 : index
    %c0_12 = arith.constant 0 : index
    %26 = vector.load %arg5[%c0_11, %c0_12] : memref<8x128xf32, #tpu.memory_space<vmem>>, vector<8x128xf32>
    tpu.vector_store %arg5[%c0_11, %c0_12], %25 {strides = array<i32>} : memref<8x128xf32, #tpu.memory_space<vmem>>, vector<8x128xf32>,
    return
  }
  func.func @transform_0(%arg0: i32) -> (i32, i32) {
    %c0_i32 = arith.constant 0 : i32
    %c0_i32_0 = arith.constant 0 : i32
    return %arg0, %c0_i32 : i32, i32
  }
  func.func @transform_1(%arg0: i32) -> (i32, i32) {
    %c0_i32 = arith.constant 0 : i32
    %c0_i32_0 = arith.constant 0 : i32
    %c0_i32_1 = arith.constant 0 : i32
    return %c0_i32, %c0_i32_0 : i32, i32
  }
  func.func @transform_2(%arg0: i32) -> (i32, i32) {
    %c0_i32 = arith.constant 0 : i32
    %c0_i32_0 = arith.constant 0 : i32
    %c0_i32_1 = arith.constant 0 : i32
    return %c0_i32, %c0_i32_0 : i32, i32
  }
  func.func @transform_3(%arg0: i32) -> (i32, i32) {
    %c0_i32 = arith.constant 0 : i32
    %c0_i32_0 = arith.constant 0 : i32
    %c0_i32_1 = arith.constant 0 : i32
    return %c0_i32, %c0_i32_0 : i32, i32
  }
  func.func @transform_4(%arg0: i32) -> (i32, i32) {
    %c0_i32 = arith.constant 0 : i32
    %c0_i32_0 = arith.constant 0 : i32
    return %arg0, %c0_i32 : i32, i32
  }
}

</mosaic_0001>

<llo_original>
// kernel: fwd.1
$region0: #{fwd.1}
  #allocation0 [shape = 'u32[]', space=smem, size = 0x4, offset = 0x4, fixed_abs, tag = 'smem constant byte address 0x4 - core index']
  #allocation1 [shape = 'u32[144,128]{1,0:T(1,128)}', space=vmem, size = 0x12000, scoped, tag = 'internal scratch']
  %s0 = inlined_call_operand.vmem [shape: f32[8,128], index: 0, kind: input, shape index: {}]
  %s1 = inlined_call_operand.hbm [shape: f32[128,128], index: 1, kind: input, shape index: {}]
  %s2 = inlined_call_operand.hbm [shape: f32[128,128], index: 2, kind: input, shape index: {}]
  %s3 = inlined_call_operand.vmem [shape: f32[3,128], index: 3, kind: input, shape index: {}]
  %s4 = inlined_call_operand.vmem [shape: f32[8,128], index: 4, kind: output, shape index: {}]
  %s5 = sld [smem:[#allocation0]]
  $region34: #{fwd.1} parent=0
    _
  %s7 = ssub.s32 1, %s5
  %s8 = scalar_select 0, %s7, %s5
  $region1: #{fwd.1} parent=0
    #allocation2 [shape = 'u8[65536]{0}', space=vmem, size = 0x10000, scoped, tag = 'input window, operand 1, single buffered']
    #allocation3 [shape = 's32[1]{0}', space=sflag, size = 0x4, scoped, tag = 'scoped memory for fwd.1']
    #allocation4 [shape = 'u8[65536]{0}', space=vmem, size = 0x10000, scoped, tag = 'input window, operand 2, single buffered']
    #allocation5 [shape = 's32[1]{0}', space=sflag, size = 0x4, scoped, tag = 'scoped memory for fwd.1']
    %9 = vsyncpa [#allocation3], 0
    %10 = vsyncpa [#allocation5], 0
    // Predicated region
    $region2: #{fwd.1} parent=1 // pred_check
      _
    $region3: #{fwd.1} parent=1 // pred_check_branch
      %12 = sbr.rel (0) target = $region5
    $region4: #{fwd.1} parent=1 // pred_region
      _
    $region5: #{fwd.1} parent=1 // pred_fallthru
      _
    // Predicated region
    $region6: #{fwd.1} parent=1 // pred_check
      _
    $region7: #{fwd.1} parent=1 // pred_check_branch
      %14 = sbr.rel (0) target = $region9
    $region8: #{fwd.1} parent=1 // pred_region
      %s16 = ssub.s32 2048, 2048
      %17 = vsyncadd [#allocation3], %s16
      %s18 = sshll.u32 [#allocation2], 4
      %s19 = int_to_ptr.vmem [resolvable:$true] %s18
      %24 = dma.hbm_to_vmem [thread:$0]  %s1, 2048, %s19, [#allocation3], 128, 128, 8
    $region9: #{fwd.1} parent=1 // pred_fallthru
      _
    // Predicated region
    $region10: #{fwd.1} parent=1 // pred_check
      _
    $region11: #{fwd.1} parent=1 // pred_check_branch
      %26 = sbr.rel (0) target = $region13
    $region12: #{fwd.1} parent=1 // pred_region
      %s28 = ssub.s32 2048, 2048
      %29 = vsyncadd [#allocation5], %s28
      %s30 = sshll.u32 [#allocation4], 4
      %s31 = int_to_ptr.vmem [resolvable:$true] %s30
      %36 = dma.hbm_to_vmem [thread:$0]  %s2, 2048, %s31, [#allocation5], 128, 128, 8
    $region13: #{fwd.1} parent=1 // pred_fallthru
      _
    // Predicated region
    $region14: #{fwd.1} parent=1 // pred_check
      _
    $region15: #{fwd.1} parent=1 // pred_check_branch
      %38 = sbr.rel (0) target = $region17
    $region16: #{fwd.1} parent=1 // pred_region
      _
    $region17: #{fwd.1} parent=1 // pred_fallthru
      _
    // Predicated region
    $region18: #{fwd.1} parent=1 // pred_check
      _
    $region19: #{fwd.1} parent=1 // pred_check_branch
      %40 = sbr.rel (0) target = $region21
    $region20: #{fwd.1} parent=1 // pred_region
      %41 = dma.done [#allocation3], 2048
    $region21: #{fwd.1} parent=1 // pred_fallthru
      _
    // Predicated region
    $region22: #{fwd.1} parent=1 // pred_check
      _
    $region23: #{fwd.1} parent=1 // pred_check_branch
      %43 = sbr.rel (0) target = $region25
    $region24: #{fwd.1} parent=1 // pred_region
      %44 = dma.done [#allocation5], 2048
    $region25: #{fwd.1} parent=1 // pred_fallthru
      _
    %v45 = vld [vmem:[%s0] sm:$0xff]
    %v46 = vld [vmem:[#allocation2] sm:$0xff]
    %v47 = vld [vmem:[#allocation2 + $0x8] sm:$0xff]
    %v48 = vld [vmem:[#allocation2 + $0x10] sm:$0xff]
    %v49 = vld [vmem:[#allocation2 + $0x18] sm:$0xff]
    %v50 = vld [vmem:[#allocation2 + $0x20] sm:$0xff]
    %v51 = vld [vmem:[#allocation2 + $0x28] sm:$0xff]
    %v52 = vld [vmem:[#allocation2 + $0x30] sm:$0xff]
    %v53 = vld [vmem:[#allocation2 + $0x38] sm:$0xff]
    %v54 = vld [vmem:[#allocation2 + $0x40] sm:$0xff]
    %v55 = vld [vmem:[#allocation2 + $0x48] sm:$0xff]
    %v56 = vld [vmem:[#allocation2 + $0x50] sm:$0xff]
    %v57 = vld [vmem:[#allocation2 + $0x58] sm:$0xff]
    %v58 = vld [vmem:[#allocation2 + $0x60] sm:$0xff]
    %v59 = vld [vmem:[#allocation2 + $0x68] sm:$0xff]
    %v60 = vld [vmem:[#allocation2 + $0x70] sm:$0xff]
    %v61 = vld [vmem:[#allocation2 + $0x78] sm:$0xff]
    %v62 = vld [vmem:[#allocation4] sm:$0xff]
    %v63 = vld [vmem:[#allocation4 + $0x8] sm:$0xff]
    %v64 = vld [vmem:[#allocation4 + $0x10] sm:$0xff]
    %v65 = vld [vmem:[#allocation4 + $0x18] sm:$0xff]
    %v66 = vld [vmem:[#allocation4 + $0x20] sm:$0xff]
    %v67 = vld [vmem:[#allocation4 + $0x28] sm:$0xff]
    %v68 = vld [vmem:[#allocation4 + $0x30] sm:$0xff]
    %v69 = vld [vmem:[#allocation4 + $0x38] sm:$0xff]
    %v70 = vld [vmem:[#allocation4 + $0x40] sm:$0xff]
    %v71 = vld [vmem:[#allocation4 + $0x48] sm:$0xff]
    %v72 = vld [vmem:[#allocation4 + $0x50] sm:$0xff]
    %v73 = vld [vmem:[#allocation4 + $0x58] sm:$0xff]
    %v74 = vld [vmem:[#allocation4 + $0x60] sm:$0xff]
    %v75 = vld [vmem:[#allocation4 + $0x68] sm:$0xff]
    %v76 = vld [vmem:[#allocation4 + $0x70] sm:$0xff]
    %v77 = vld [vmem:[#allocation4 + $0x78] sm:$0xff]
    %v78 = vld [vmem:[%s3] sm:$0x7]
    %v79 = vlaneseq
    %v80 = vshrl.u32 %v79, 7
    %v81 = vsub.s32 0, %v80
    %v82 = vrot.slane %v78, %v81
    %83 = vmatprep.subr.mxu0 0.0
    %84 = vmatpush1.msra.mxu0 %v46
    %85 = vmatprep.subr.mxu0 0.0
    %86 = vmatpush1.msra.mxu0 %v47
    %87 = vmatprep.subr.mxu0 0.0
    %88 = vmatpush1.msra.mxu0 %v48
    %89 = vmatprep.subr.mxu0 0.0
    %90 = vmatpush1.msra.mxu0 %v49
    %91 = vmatprep.subr.mxu0 0.0
    %92 = vmatpush1.msra.mxu0 %v50
    %93 = vmatprep.subr.mxu0 0.0
    %94 = vmatpush1.msra.mxu0 %v51
    %95 = vmatprep.subr.mxu0 0.0
    %96 = vmatpush1.msra.mxu0 %v52
    %97 = vmatprep.subr.mxu0 0.0
    %98 = vmatpush1.msra.mxu0 %v53
    %99 = vmatprep.subr.mxu0 0.0
    %100 = vmatpush1.msra.mxu0 %v54
    %101 = vmatprep.subr.mxu0 0.0
    %102 = vmatpush1.msra.mxu0 %v55
    %103 = vmatprep.subr.mxu0 0.0
    %104 = vmatpush1.msra.mxu0 %v56
    %105 = vmatprep.subr.mxu0 0.0
    %106 = vmatpush1.msra.mxu0 %v57
    %107 = vmatprep.subr.mxu0 0.0
    %108 = vmatpush1.msra.mxu0 %v58
    %109 = vmatprep.subr.mxu0 0.0
    %110 = vmatpush1.msra.mxu0 %v59
    %111 = vmatprep.subr.mxu0 0.0
    %112 = vmatpush1.msra.mxu0 %v60
    %113 = vmatprep.subr.mxu0 0.0
    %114 = vmatpush1.msra.mxu0 %v61
    %115 = vmatprep.subr.mxu0 0.0
    %116 = vmatpush1.msra.mxu0 0.0
    %117 = vmatprep.subr.mxu0 0.0
    %118 = vmatpush1.msra.mxu0 0.0
    %119 = vmatprep.subr.mxu0 0.0
    %120 = vmatpush1.msra.mxu0 0.0
    %121 = vmatprep.subr.mxu0 0.0
    %122 = vmatpush1.msra.mxu0 0.0
    %123 = vmatprep.subr.mxu0 0.0
    %124 = vmatpush1.msra.mxu0 0.0
    %125 = vmatprep.subr.mxu0 0.0
    %126 = vmatpush1.msra.mxu0 0.0
    %127 = vmatprep.subr.mxu0 0.0
    %128 = vmatpush1.msra.mxu0 0.0
    %129 = vmatprep.subr.mxu0 0.0
    %130 = vmatpush1.msra.mxu0 0.0
    %131 = vmatprep.subr.mxu0 0.0
    %132 = vmatpush1.msra.mxu0 0.0
    %133 = vmatprep.subr.mxu0 0.0
    %134 = vmatpush1.msra.mxu0 0.0
    %135 = vmatprep.subr.mxu0 0.0
    %136 = vmatpush1.msra.mxu0 0.0
    %137 = vmatprep.subr.mxu0 0.0
    %138 = vmatpush1.msra.mxu0 0.0
    %139 = vmatprep.subr.mxu0 0.0
    %140 = vmatpush1.msra.mxu0 0.0
    %141 = vmatprep.subr.mxu0 0.0
    %142 = vmatpush1.msra.mxu0 0.0
    %143 = vmatprep.subr.mxu0 0.0
    %144 = vmatpush1.msra.mxu0 0.0
    %145 = vmatprep.subr.mxu0 0.0
    %146 = vmatpush1.msra.mxu0 0.0
    %147 = vmatprep.mubr.f32.mxu0 0.0
    %148 = vmatmul.mubr.f32.gmra.mrb[0].mxu0 %v45
    %v149 = vpop.f32.mrb[0].mxu0
    %v150 = vadd.f32 %v82, %v149
    %v151 = vpop.f32.mrb[0].mxu0
    %152 = vdwg.mxu0
    %153 = vmatprep.subr.mxu0 0.0
    %154 = vmatpush1.msra.mxu0 %v62
    %155 = vmatprep.subr.mxu0 0.0
    %156 = vmatpush1.msra.mxu0 %v63
    %157 = vmatprep.subr.mxu0 0.0
    %158 = vmatpush1.msra.mxu0 %v64
    %159 = vmatprep.subr.mxu0 0.0
    %160 = vmatpush1.msra.mxu0 %v65
    %161 = vmatprep.subr.mxu0 0.0
    %162 = vmatpush1.msra.mxu0 %v66
    %163 = vmatprep.subr.mxu0 0.0
    %164 = vmatpush1.msra.mxu0 %v67
    %165 = vmatprep.subr.mxu0 0.0
    %166 = vmatpush1.msra.mxu0 %v68
    %167 = vmatprep.subr.mxu0 0.0
    %168 = vmatpush1.msra.mxu0 %v69
    %169 = vmatprep.subr.mxu0 0.0
    %170 = vmatpush1.msra.mxu0 %v70
    %171 = vmatprep.subr.mxu0 0.0
    %172 = vmatpush1.msra.mxu0 %v71
    %173 = vmatprep.subr.mxu0 0.0
    %174 = vmatpush1.msra.mxu0 %v72
    %175 = vmatprep.subr.mxu0 0.0
    %176 = vmatpush1.msra.mxu0 %v73
    %177 = vmatprep.subr.mxu0 0.0
    %178 = vmatpush1.msra.mxu0 %v74
    %179 = vmatprep.subr.mxu0 0.0
    %180 = vmatpush1.msra.mxu0 %v75
    %181 = vmatprep.subr.mxu0 0.0
    %182 = vmatpush1.msra.mxu0 %v76
    %183 = vmatprep.subr.mxu0 0.0
    %184 = vmatpush1.msra.mxu0 %v77
    %185 = vmatprep.subr.mxu0 0.0
    %186 = vmatpush1.msra.mxu0 0.0
    %187 = vmatprep.subr.mxu0 0.0
    %188 = vmatpush1.msra.mxu0 0.0
    %189 = vmatprep.subr.mxu0 0.0
    %190 = vmatpush1.msra.mxu0 0.0
    %191 = vmatprep.subr.mxu0 0.0
    %192 = vmatpush1.msra.mxu0 0.0
    %193 = vmatprep.subr.mxu0 0.0
    %194 = vmatpush1.msra.mxu0 0.0
    %195 = vmatprep.subr.mxu0 0.0
    %196 = vmatpush1.msra.mxu0 0.0
    %197 = vmatprep.subr.mxu0 0.0
    %198 = vmatpush1.msra.mxu0 0.0
    %199 = vmatprep.subr.mxu0 0.0
    %200 = vmatpush1.msra.mxu0 0.0
    %201 = vmatprep.subr.mxu0 0.0
    %202 = vmatpush1.msra.mxu0 0.0
    %203 = vmatprep.subr.mxu0 0.0
    %204 = vmatpush1.msra.mxu0 0.0
    %205 = vmatprep.subr.mxu0 0.0
    %206 = vmatpush1.msra.mxu0 0.0
    %207 = vmatprep.subr.mxu0 0.0
    %208 = vmatpush1.msra.mxu0 0.0
    %209 = vmatprep.subr.mxu0 0.0
    %210 = vmatpush1.msra.mxu0 0.0
    %211 = vmatprep.subr.mxu0 0.0
    %212 = vmatpush1.msra.mxu0 0.0
    %213 = vmatprep.subr.mxu0 0.0
    %214 = vmatpush1.msra.mxu0 0.0
    %215 = vmatprep.subr.mxu0 0.0
    %216 = vmatpush1.msra.mxu0 0.0
    %217 = vmatprep.mubr.f32.mxu0 0.0
    %218 = vmatmul.mubr.f32.gmra.mrb[0].mxu0 %v150
    %v219 = vpop.f32.mrb[0].mxu0
    %v220 = vadd.f32 0.0, %v219
    %v221 = vpop.f32.mrb[0].mxu0
    %222 = vdwg.mxu0
    %v223 = vmul.f32 %v150, %v150
    %224 = vmatprep.subr.mxu0 0.0
    %225 = vmatpush1.msra.mxu0 %v62
    %226 = vmatprep.subr.mxu0 0.0
    %227 = vmatpush1.msra.mxu0 %v63
    %228 = vmatprep.subr.mxu0 0.0
    %229 = vmatpush1.msra.mxu0 %v64
    %230 = vmatprep.subr.mxu0 0.0
    %231 = vmatpush1.msra.mxu0 %v65
    %232 = vmatprep.subr.mxu0 0.0
    %233 = vmatpush1.msra.mxu0 %v66
    %234 = vmatprep.subr.mxu0 0.0
    %235 = vmatpush1.msra.mxu0 %v67
    %236 = vmatprep.subr.mxu0 0.0
    %237 = vmatpush1.msra.mxu0 %v68
    %238 = vmatprep.subr.mxu0 0.0
    %239 = vmatpush1.msra.mxu0 %v69
    %240 = vmatprep.subr.mxu0 0.0
    %241 = vmatpush1.msra.mxu0 %v70
    %242 = vmatprep.subr.mxu0 0.0
    %243 = vmatpush1.msra.mxu0 %v71
    %244 = vmatprep.subr.mxu0 0.0
    %245 = vmatpush1.msra.mxu0 %v72
    %246 = vmatprep.subr.mxu0 0.0
    %247 = vmatpush1.msra.mxu0 %v73
    %248 = vmatprep.subr.mxu0 0.0
    %249 = vmatpush1.msra.mxu0 %v74
    %250 = vmatprep.subr.mxu0 0.0
    %251 = vmatpush1.msra.mxu0 %v75
    %252 = vmatprep.subr.mxu0 0.0
    %253 = vmatpush1.msra.mxu0 %v76
    %254 = vmatprep.subr.mxu0 0.0
    %255 = vmatpush1.msra.mxu0 %v77
    %256 = vmatprep.subr.mxu0 0.0
    %257 = vmatpush1.msra.mxu0 0.0
    %258 = vmatprep.subr.mxu0 0.0
    %259 = vmatpush1.msra.mxu0 0.0
    %260 = vmatprep.subr.mxu0 0.0
    %261 = vmatpush1.msra.mxu0 0.0
    %262 = vmatprep.subr.mxu0 0.0
    %263 = vmatpush1.msra.mxu0 0.0
    %264 = vmatprep.subr.mxu0 0.0
    %265 = vmatpush1.msra.mxu0 0.0
    %266 = vmatprep.subr.mxu0 0.0
    %267 = vmatpush1.msra.mxu0 0.0
    %268 = vmatprep.subr.mxu0 0.0
    %269 = vmatpush1.msra.mxu0 0.0
    %270 = vmatprep.subr.mxu0 0.0
    %271 = vmatpush1.msra.mxu0 0.0
    %272 = vmatprep.subr.mxu0 0.0
    %273 = vmatpush1.msra.mxu0 0.0
    %274 = vmatprep.subr.mxu0 0.0
    %275 = vmatpush1.msra.mxu0 0.0
    %276 = vmatprep.subr.mxu0 0.0
    %277 = vmatpush1.msra.mxu0 0.0
    %278 = vmatprep.subr.mxu0 0.0
    %279 = vmatpush1.msra.mxu0 0.0
    %280 = vmatprep.subr.mxu0 0.0
    %281 = vmatpush1.msra.mxu0 0.0
    %282 = vmatprep.subr.mxu0 0.0
    %283 = vmatpush1.msra.mxu0 0.0
    %284 = vmatprep.subr.mxu0 0.0
    %285 = vmatpush1.msra.mxu0 0.0
    %286 = vmatprep.subr.mxu0 0.0
    %287 = vmatpush1.msra.mxu0 0.0
    %288 = vmatprep.mubr.f32.mxu0 0.0
    %289 = vmatmul.mubr.f32.gmra.mrb[0].mxu0 %v223
    %v290 = vpop.f32.mrb[0].mxu0
    %v291 = vadd.f32 0.0, %v290
    %v292 = vpop.f32.mrb[0].mxu0
    %293 = vdwg.mxu0
    %v294 = vmul.f32 %v220, %v220
    %v295 = vsub.f32 %v291, %v294
    %v296 = vmax.f32 %v295, 0.0
    %v297 = vsub.f32 %v150, %v220
    %v298 = vadd.f32 %v296, 1e-05
    %v299 = vrsqrt.pop %v298
    %v300 = vmul.f32 %v297, %v299
    %v301 = vlaneseq
    %v302 = vshrl.u32 %v301, 7
    %v303 = vsub.s32 1, %v302
    %v304 = vrot.slane %v78, %v303
    %v305 = vmul.f32 %v300, %v304
    %v306 = vlaneseq
    %v307 = vshrl.u32 %v306, 7
    %v308 = vsub.s32 2, %v307
    %v309 = vrot.slane %v78, %v308
    %v310 = vadd.f32 %v305, %v309
    %311 = vst [vmem:[%s4] sm:$0xff] %v310
    // Predicated region
    $region26: #{fwd.1} parent=1 // pred_check
      _
    $region27: #{fwd.1} parent=1 // pred_check_branch
      %313 = sbr.rel (0) target = $region29
    $region28: #{fwd.1} parent=1 // pred_region
      _
    $region29: #{fwd.1} parent=1 // pred_fallthru
      _
    // Predicated region
    $region30: #{fwd.1} parent=1 // pred_check
      _
    $region31: #{fwd.1} parent=1 // pred_check_branch
      %315 = sbr.rel (0) target = $region33
    $region32: #{fwd.1} parent=1 // pred_region
      _
    $region33: #{fwd.1} parent=1 // pred_fallthru
      _
    %316 = vsyncpa [#allocation3], 1
    %317 = vsyncpa [#allocation5], 1

</llo_original>
